<compile_context>
chip_gen: v6e
topology: v6e:2x2x1
jax: 0.10.0
libtpu: 0.0.40
codegen_flags: <defaults>
</compile_context>

<pallas_src>
import functools

import jax
import jax.numpy as jnp
from jax import lax
from jax.experimental import pallas as pl
from jax.experimental.pallas import tpu as pltpu


def _focal_kernel(logits_ref, tgt_ref, alpha_ref, out_ref, *, gamma, n_rows, tm):
    """One row tile: per-row focal loss written straight to its output block."""
    i = pl.program_id(0)

    x = logits_ref[...].astype(jnp.float32)                   # (tm, C)
    tgt = tgt_ref[...]                                         # (tm, 1) int32

    # one-hot selector via broadcast compare; reused for logit & alpha gathers
    col = lax.broadcasted_iota(jnp.int32, (1, x.shape[1]), 1)  # (1, C)
    sel = col == tgt                                           # (tm, C) bool

    # log-softmax pieces over the class axis (lanes)
    m = jnp.max(x, axis=-1, keepdims=True)                     # (tm, 1)
    gathered = jnp.sum(jnp.where(sel, x, 0.0), axis=-1, keepdims=True)
    lse = jnp.log(jnp.sum(jnp.exp(x - m), axis=-1, keepdims=True))

    logpt = gathered - m - lse                                  # (tm, 1)
    pt = jnp.exp(logpt)

    # alpha gather: at = alpha[target]   (alpha is all-ones when alpha=None)
    at = jnp.sum(jnp.where(sel, alpha_ref[...], 0.0), axis=-1, keepdims=True)
    logpt = logpt * at

    one_m_pt = 1.0 - pt
    g = float(gamma)
    if g == 0.0:
        factor = jnp.ones_like(pt)
    elif g.is_integer() and 0 < g <= 16:
        factor = one_m_pt
        for _ in range(int(g) - 1):
            factor = factor * one_m_pt
    else:
        factor = jnp.power(one_m_pt, g)

    loss = -factor * logpt                                      # (tm, 1)

    # Trailing partial block may contain garbage (NaN/Inf) rows: mask by row id.
    row = i * tm + lax.broadcasted_iota(jnp.int32, (tm, 1), 0)
    out_ref[...] = jnp.where(row < n_rows, loss, 0.0)


def _vmem_capacity_bytes():
    try:
        return int(pltpu.get_tpu_info().vmem_capacity_bytes)
    except Exception:
        return 64 << 20        # conservative (v7x-sized) fallback


def focal_loss(logits, target, *, gamma=2.0, alpha=None, size_average=True,
               tm=None):
    """Pallas implementation of FocalLoss.forward(input, target)."""
    N, C = logits.shape

    # ---- generation-aware tile sizing (sized on the f32 working set) -------
    vmem_cap = _vmem_capacity_bytes()
    if vmem_cap >= (96 << 20):        # v5e / v6e: 128 MiB physical VMEM
        f32_block_target = 8 << 20
        vmem_limit = 96 << 20
        tm_cap = 8192
    else:                             # v7x: 64 MiB VMEM per TensorCore
        f32_block_target = 3 << 20
        vmem_limit = 48 << 20
        tm_cap = 4096

    if tm is None:
        tm = (f32_block_target // 4) // C
        tm = max(8, min(tm_cap, (tm // 8) * 8))
    if tm >= N:
        tm = N                        # single block == full row extent (legal)
    assert tm == N or tm % 8 == 0, "tm must be a multiple of 8 (or equal N)"
    steps = pl.cdiv(N, tm)

    # ---- inputs: no HBM-side padding of the logits -------------------------
    tgt2d = target.reshape(-1).astype(jnp.int32).reshape(N, 1)

    if alpha is None:
        alpha_vec = jnp.ones((1, C), jnp.float32)      # at == 1 for every row
    else:
        if isinstance(alpha, (float, int)):
            # PyTorch binary-class convention: scalar alpha -> [alpha, 1-alpha]
            a = jnp.asarray([float(alpha), 1.0 - float(alpha)], jnp.float32)
        else:
            a = jnp.asarray(alpha, jnp.float32).reshape(-1)
        assert a.shape[0] == C, (
            f"alpha must provide one weight per class ({C}); got {a.shape[0]}")
        alpha_vec = a.reshape(1, C)

    kernel = functools.partial(_focal_kernel, gamma=float(gamma), n_rows=N,
                               tm=tm)

    per_row = pl.pallas_call(
        kernel,
        out_shape=jax.ShapeDtypeStruct((N, 1), jnp.float32),
        grid=(steps,),
        in_specs=[
            pl.BlockSpec((tm, C), lambda i: (i, 0)),     # logits tile
            pl.BlockSpec((tm, 1), lambda i: (i, 0)),     # targets tile
            pl.BlockSpec((1, C), lambda i: (0, 0)),      # alpha (resident)
        ],
        out_specs=pl.BlockSpec((tm, 1), lambda i: (i, 0)),
        compiler_params=pltpu.CompilerParams(
            dimension_semantics=("parallel",),           # megacore-shardable
            vmem_limit_bytes=int(vmem_limit)),
    )(logits, tgt2d, alpha_vec)

    total = jnp.sum(per_row)                             # epilogue reduce in XLA
    if size_average:
        return total / jnp.float32(N)
    return total


def _reference(logits, target, *, gamma=2.0, alpha=None, size_average=True):
    logp = jax.nn.log_softmax(logits.astype(jnp.float32), axis=1)
    logpt = jnp.take_along_axis(logp, target.reshape(-1, 1).astype(jnp.int32),
                                axis=1).reshape(-1)
    pt = jnp.exp(logpt)
    if alpha is not None:
        at = jnp.asarray(alpha, jnp.float32)[target.astype(jnp.int32)]
        logpt = logpt * at
    loss = -1.0 * (1.0 - pt) ** gamma * logpt
    return jnp.mean(loss) if size_average else jnp.sum(loss)


if __name__ == "__main__":
    key = jax.random.PRNGKey(0)
    N, C = 16, 32
    k1, k2, k3, k4 = jax.random.split(key, 4)
    logits = jax.random.normal(k1, (N, C), dtype=jnp.float32)
    target = jax.random.randint(k2, (N,), 0, C, dtype=jnp.int32)

    # deterministic per-class alpha weights (exercises the alpha-gather path)
    alpha = [0.25 + 0.5 * (c % 2) for c in range(C)]

    # 1) alpha + mean reduction
    out = jax.block_until_ready(
        focal_loss(logits, target, gamma=2.0, alpha=alpha, size_average=True))
    ref = _reference(logits, target, gamma=2.0, alpha=alpha, size_average=True)
    assert jnp.allclose(out, ref, rtol=1e-5, atol=1e-6), (out, ref)

    # 2) default alpha=None, sum reduction
    out2 = jax.block_until_ready(
        focal_loss(logits, target, gamma=2.0, alpha=None, size_average=False))
    ref2 = _reference(logits, target, gamma=2.0, alpha=None, size_average=False)
    assert jnp.allclose(out2, ref2, rtol=1e-5, atol=1e-6), (out2, ref2)

    # 3) N not a multiple of 8 (single full-extent block, no padding)
    out3 = jax.block_until_ready(
        focal_loss(logits[:13], target[:13], gamma=2.0, alpha=alpha,
                   size_average=True))
    ref3 = _reference(logits[:13], target[:13], gamma=2.0, alpha=alpha,
                      size_average=True)
    assert jnp.allclose(out3, ref3, rtol=1e-5, atol=1e-6), (out3, ref3)

    # 4) bf16 logits (kernel casts to f32 internally)
    logits_bf16 = logits.astype(jnp.bfloat16)
    out4 = jax.block_until_ready(
        focal_loss(logits_bf16, target, gamma=2.0, alpha=None,
                   size_average=True))
    ref4 = _reference(logits_bf16, target, gamma=2.0, alpha=None,
                      size_average=True)
    assert jnp.allclose(out4, ref4, rtol=1e-4, atol=1e-5), (out4, ref4)

    # 5) multi-step grid with a partial trailing block (tm override, no padding)
    N5 = 40
    logits5 = jax.random.normal(k3, (N5, C), dtype=jnp.float32)
    target5 = jax.random.randint(k4, (N5,), 0, C, dtype=jnp.int32)
    out5 = jax.block_until_ready(
        focal_loss(logits5, target5, gamma=2.0, alpha=alpha,
                   size_average=True, tm=16))
    ref5 = _reference(logits5, target5, gamma=2.0, alpha=alpha,
                      size_average=True)
    assert jnp.allclose(out5, ref5, rtol=1e-5, atol=1e-6), (out5, ref5)

    print("KERNEL_OK")
</pallas_src>

<mosaic_0001>
module attributes {stable_mosaic.version = 11 : i64} {
  func.func @_focal_kernel(%arg0: i32, %arg1: memref<16x32xf32, #tpu.memory_space<vmem>>, %arg2: memref<16x1xi32, #tpu.memory_space<vmem>>, %arg3: memref<1x32xf32, #tpu.memory_space<vmem>>, %arg4: memref<16x1xf32, #tpu.memory_space<vmem>>) attributes {dimension_semantics = [#tpu.dimension_semantics<parallel>], iteration_bounds = array<i64: 1>, scalar_prefetch = 0 : i64, scratch_operands = 0 : i64, tpu.core_type = #tpu.core_type<tc>, window_params = [{transform_indices = @transform_0, window_bounds = array<i64: 16, 32>}, {transform_indices = @transform_1, window_bounds = array<i64: 16, 1>}, {pipeline_mode = #tpu.pipeline_mode<synchronous>, transform_indices = @transform_2, window_bounds = array<i64: 1, 32>}, {transform_indices = @transform_3, window_bounds = array<i64: 16, 1>}]} {
    %c0 = arith.constant 0 : index
    %c0_0 = arith.constant 0 : index
    %0 = vector.load %arg1[%c0, %c0_0] : memref<16x32xf32, #tpu.memory_space<vmem>>, vector<16x32xf32>
    %c0_1 = arith.constant 0 : index
    %c0_2 = arith.constant 0 : index
    %1 = vector.load %arg2[%c0_1, %c0_2] : memref<16x1xi32, #tpu.memory_space<vmem>>, vector<16x1xi32>
    %2 = tpu.iota {dimensions = array<i32: 1>} : vector<1x32xi32>
    %3 = vector.broadcast %2 : vector<1x32xi32> to vector<16x32xi32>
    %4 = vector.broadcast %1 : vector<16x1xi32> to vector<16x32xi32>
    %5 = arith.cmpi eq, %3, %4 : vector<16x32xi32>
    %cst = arith.constant dense<0xFF800000> : vector<16xf32>
    %6 = vector.multi_reduction <maximumf>, %0, %cst [1] : vector<16x32xf32> to vector<16xf32>
    %7 = vector.shape_cast %6 : vector<16xf32> to vector<16x1xf32>
    %cst_3 = arith.constant 0.000000e+00 : f32
    %8 = vector.broadcast %cst_3 : f32 to vector<16x32xf32>
    %9 = arith.select %5, %0, %8 : vector<16x32xi1>, vector<16x32xf32>
    %cst_4 = arith.constant dense<0.000000e+00> : vector<16xf32>
    %10 = vector.multi_reduction <add>, %9, %cst_4 [1] : vector<16x32xf32> to vector<16xf32>
    %11 = vector.shape_cast %10 : vector<16xf32> to vector<16x1xf32>
    %12 = vector.broadcast %7 : vector<16x1xf32> to vector<16x32xf32>
    %13 = arith.subf %0, %12 : vector<16x32xf32>
    %14 = math.exp %13 : vector<16x32xf32>
    %cst_5 = arith.constant dense<0.000000e+00> : vector<16xf32>
    %15 = vector.multi_reduction <add>, %14, %cst_5 [1] : vector<16x32xf32> to vector<16xf32>
    %16 = vector.shape_cast %15 : vector<16xf32> to vector<16x1xf32>
    %17 = math.log %16 : vector<16x1xf32>
    %18 = arith.subf %11, %7 : vector<16x1xf32>
    %19 = arith.subf %18, %17 : vector<16x1xf32>
    %20 = math.exp %19 : vector<16x1xf32>
    %c0_6 = arith.constant 0 : index
    %c0_7 = arith.constant 0 : index
    %21 = vector.load %arg3[%c0_6, %c0_7] : memref<1x32xf32, #tpu.memory_space<vmem>>, vector<1x32xf32>
    %cst_8 = arith.constant 0.000000e+00 : f32
    %22 = vector.shape_cast %21 : vector<1x32xf32> to vector<1x32xf32>
    %23 = vector.broadcast %22 : vector<1x32xf32> to vector<16x32xf32>
    %24 = vector.broadcast %cst_8 : f32 to vector<16x32xf32>
    %25 = arith.select %5, %23, %24 : vector<16x32xi1>, vector<16x32xf32>
    %cst_9 = arith.constant dense<0.000000e+00> : vector<16xf32>
    %26 = vector.multi_reduction <add>, %25, %cst_9 [1] : vector<16x32xf32> to vector<16xf32>
    %27 = vector.shape_cast %26 : vector<16xf32> to vector<16x1xf32>
    %28 = arith.mulf %19, %27 : vector<16x1xf32>
    %cst_10 = arith.constant 1.000000e+00 : f32
    %29 = vector.broadcast %cst_10 : f32 to vector<16x1xf32>
    %30 = arith.subf %29, %20 : vector<16x1xf32>
    %31 = arith.mulf %30, %30 : vector<16x1xf32>
    %cst_11 = arith.constant 0.000000e+00 : f32
    %32 = vector.broadcast %cst_11 : f32 to vector<16x1xf32>
    %33 = arith.subf %32, %31 : vector<16x1xf32>
    %34 = arith.mulf %33, %28 : vector<16x1xf32>
    %c16_i32 = arith.constant 16 : i32
    %35 = arith.muli %arg0, %c16_i32 : i32
    %36 = tpu.iota {dimensions = array<i32: 0>} : vector<16x1xi32>
    %37 = vector.broadcast %35 : i32 to vector<16x1xi32>
    %38 = arith.addi %37, %36 : vector<16x1xi32>
    %c16_i32_12 = arith.constant 16 : i32
    %39 = vector.broadcast %c16_i32_12 : i32 to vector<16x1xi32>
    %40 = arith.cmpi slt, %38, %39 : vector<16x1xi32>
    %cst_13 = arith.constant 0.000000e+00 : f32
    %41 = vector.broadcast %cst_13 : f32 to vector<16x1xf32>
    %42 = arith.select %40, %34, %41 : vector<16x1xi1>, vector<16x1xf32>
    %c0_14 = arith.constant 0 : index
    %c0_15 = arith.constant 0 : index
    %43 = vector.load %arg4[%c0_14, %c0_15] : memref<16x1xf32, #tpu.memory_space<vmem>>, vector<16x1xf32>
    tpu.vector_store %arg4[%c0_14, %c0_15], %42 {strides = array<i32>} : memref<16x1xf32, #tpu.memory_space<vmem>>, vector<16x1xf32>,
    return
  }
  func.func @transform_0(%arg0: i32) -> (i32, i32) {
    %c0_i32 = arith.constant 0 : i32
    %c0_i32_0 = arith.constant 0 : i32
    return %arg0, %c0_i32 : i32, i32
  }
  func.func @transform_1(%arg0: i32) -> (i32, i32) {
    %c0_i32 = arith.constant 0 : i32
    %c0_i32_0 = arith.constant 0 : i32
    return %arg0, %c0_i32 : i32, i32
  }
  func.func @transform_2(%arg0: i32) -> (i32, i32) {
    %c0_i32 = arith.constant 0 : i32
    %c0_i32_0 = arith.constant 0 : i32
    %c0_i32_1 = arith.constant 0 : i32
    return %c0_i32, %c0_i32_0 : i32, i32
  }
  func.func @transform_3(%arg0: i32) -> (i32, i32) {
    %c0_i32 = arith.constant 0 : i32
    %c0_i32_0 = arith.constant 0 : i32
    return %arg0, %c0_i32 : i32, i32
  }
}

</mosaic_0001>

<llo_original>
// kernel: tpu_custom_call.1
$region0: #{tpu_custom_call.1}
  #allocation0 [shape = 'u32[]', space=smem, size = 0x4, offset = 0x4, fixed_abs, tag = 'smem constant byte address 0x4 - core index']
  #allocation1 [shape = 'u32[144,128]{1,0:T(1,128)}', space=vmem, size = 0x12000, scoped, tag = 'internal scratch']
  %s0 = inlined_call_operand.vmem [shape: f32[16,32], index: 0, kind: input, shape index: {}]
  %s1 = inlined_call_operand.vmem [shape: s32[16,1], index: 1, kind: input, shape index: {}]
  %s2 = inlined_call_operand.vmem [shape: f32[1,32], index: 2, kind: input, shape index: {}]
  %s3 = inlined_call_operand.vmem [shape: f32[16,1], index: 3, kind: output, shape index: {}]
  %s4 = sld [smem:[#allocation0]]
  $region22: #{tpu_custom_call.1} parent=0
    _
  %s6 = ssub.s32 1, %s4
  %s7 = scalar_select 0, %s6, %s4
  // Predicated region
  $region2: #{tpu_custom_call.1} parent=0 // pred_check
    _
  $region3: #{tpu_custom_call.1} parent=0 // pred_check_branch
    %9 = sbr.rel (0) target = $region5
  $region4: #{tpu_custom_call.1} parent=0 // pred_region
    _
  $region5: #{tpu_custom_call.1} parent=0 // pred_fallthru
    _
  // Predicated region
  $region6: #{tpu_custom_call.1} parent=0 // pred_check
    _
  $region7: #{tpu_custom_call.1} parent=0 // pred_check_branch
    %11 = sbr.rel (0) target = $region9
  $region8: #{tpu_custom_call.1} parent=0 // pred_region
    _
  $region9: #{tpu_custom_call.1} parent=0 // pred_fallthru
    _
  // Predicated region
  $region10: #{tpu_custom_call.1} parent=0 // pred_check
    _
  $region11: #{tpu_custom_call.1} parent=0 // pred_check_branch
    %13 = sbr.rel (0) target = $region13
  $region12: #{tpu_custom_call.1} parent=0 // pred_region
    _
  $region13: #{tpu_custom_call.1} parent=0 // pred_fallthru
    _
  %v14 = vld [vmem:[%s0] sm:$0xff]
  %v15 = vld [vmem:[%s0 + $0x8] sm:$0xff]
  %v16 = vld [vmem:[%s1] sm:$0xff]
  %v17 = vld [vmem:[%s1 + $0x8] sm:$0xff]
  %v18 = vlaneseq
  %v19 = vand.u32 %v18, 127
  %20 = vset.pattern.permute.xlu0 0
  %21 = vperm.xlu0 %20, %v16
  %v22 = vpop.permute.xlu0 %21
  %23 = vset.pattern.permute.xlu0 0
  %24 = vperm.xlu0 %23, %v17
  %v25 = vpop.permute.xlu0 %24
  %vm26 = vcmp.eq.s32.totalorder %v19, %v22
  %vm27 = vcmp.eq.s32.totalorder %v19, %v25
  %vm28 = vcmask 261120
  %v29 = vsel %vm28, %v14, -inf
  %30 = vmax.xlane.f32.xlu0 %v29
  %v31 = vpop.xlane.xlu0 %30
  %v32 = vsel %vm28, %v15, -inf
  %33 = vmax.xlane.f32.xlu0 %v32
  %v34 = vpop.xlane.xlu0 %33
  %v35 = vsel %vm26, %v14, 0.0
  %v36 = vsel %vm27, %v15, 0.0
  %v37 = vsel %vm28, %v35, 0.0
  %38 = vadd.xlane.f32.xlu0 %v37
  %v39 = vpop.xlane.xlu0 %38
  %v40 = vsel %vm28, %v36, 0.0
  %41 = vadd.xlane.f32.xlu0 %v40
  %v42 = vpop.xlane.xlu0 %41
  %v43 = vsub.f32 %v14, %v31
  %v44 = vsub.f32 %v15, %v34
  %v45 = vmul.f32 %v43, 1.442695
  %v46 = vpow.pop %v45
  %v47 = vmul.f32 %v44, 1.442695
  %v48 = vpow.pop %v47
  %v49 = vsel %vm28, %v46, 0.0
  %50 = vadd.xlane.f32.xlu0 %v49
  %v51 = vpop.xlane.xlu0 %50
  %v52 = vsel %vm28, %v48, 0.0
  %53 = vadd.xlane.f32.xlu0 %v52
  %v54 = vpop.xlane.xlu0 %53
  %v55 = vlog2.pop %v51
  %v56 = vmul.f32 %v55, 0.6931472
  %v57 = vlog2.pop %v54
  %v58 = vmul.f32 %v57, 0.6931472
  %v59 = vsub.f32 %v39, %v31
  %v60 = vsub.f32 %v42, %v34
  %v61 = vsub.f32 %v59, %v56
  %v62 = vsub.f32 %v60, %v58
  %v63 = vmul.f32 %v61, 1.442695
  %v64 = vpow.pop %v63
  %v65 = vmul.f32 %v62, 1.442695
  %v66 = vpow.pop %v65
  %v67 = vld [vmem:[%s2] sm:$0x1]
  %v69 = vlaneseq
  %v70 = vshrl.u32 %v69, 7
  %v71 = vsub.s32 0, %v70
  %v72 = vrot.slane %v67, %v71
  %v74 = vsel %vm26, %v72, 0.0
  %v75 = vsel %vm27, %v72, 0.0
  %v76 = vsel %vm28, %v74, 0.0
  %77 = vadd.xlane.f32.xlu0 %v76
  %v78 = vpop.xlane.xlu0 %77
  %v79 = vsel %vm28, %v75, 0.0
  %80 = vadd.xlane.f32.xlu0 %v79
  %v81 = vpop.xlane.xlu0 %80
  %v82 = vmul.f32 %v61, %v78
  %v83 = vmul.f32 %v62, %v81
  %v84 = vsub.f32 1.0, %v64
  %v85 = vsub.f32 1.0, %v66
  %v86 = vmul.f32 %v84, %v84
  %v87 = vmul.f32 %v85, %v85
  %v88 = vsub.f32 0.0, %v86
  %v89 = vsub.f32 0.0, %v87
  %v90 = vmul.f32 %v88, %v82
  %v91 = vmul.f32 %v89, %v83
  %s92 = smul.u32 0, 16
  %v93 = vlaneseq
  %v94 = vshrl.u32 %v93, 7
  %v95 = vadd.s32 %v94, 8
  %v96 = vstv %s92
  %v97 = vadd.s32 %v96, %v94
  %v98 = vadd.s32 %v96, %v95
  %vm99 = vcmp.lt.s32.totalorder %v97, 16
  %vm100 = vcmp.lt.s32.totalorder %v98, 16
  %v101 = vsel %vm99, %v90, 0.0
  %v102 = vsel %vm100, %v91, 0.0
  %vm103 = vcmask 7168
  %104 = vst.msk [vmem:[%s3] sm:$0xff] %vm103, %v101
  %105 = vst.msk [vmem:[%s3 + $0x8] sm:$0xff] %vm103, %v102
  // Predicated region
  $region14: #{tpu_custom_call.1} parent=0 // pred_check
    _
  $region15: #{tpu_custom_call.1} parent=0 // pred_check_branch
    %107 = sbr.rel (0) target = $region17
  $region16: #{tpu_custom_call.1} parent=0 // pred_region
    _
  $region17: #{tpu_custom_call.1} parent=0 // pred_fallthru
    _
  // Predicated region
  $region18: #{tpu_custom_call.1} parent=0 // pred_check
    _
  $region19: #{tpu_custom_call.1} parent=0 // pred_check_branch
    %109 = sbr.rel (0) target = $region21
  $region20: #{tpu_custom_call.1} parent=0 // pred_region
    _
  $region21: #{tpu_custom_call.1} parent=0 // pred_fallthru
    _

</llo_original>
